<compile_context>
chip_gen: v7x
topology: tpu7x:2x2x1
jax: 0.10.0
libtpu: 0.0.40
codegen_flags: <defaults>
</compile_context>

<pallas_src>
import functools

import jax
import jax.numpy as jnp
from jax.experimental import pallas as pl
from jax.experimental.pallas import tpu as pltpu


def _round_up(n, m):
    return ((n + m - 1) // m) * m


def _vmem_capacity_bytes():
    """Physical VMEM per TensorCore (generation aware), with a safe fallback."""
    try:
        return int(pltpu.get_tpu_info().vmem_capacity_bytes)
    except Exception:
        return 64 << 20  # conservative fallback: v7x per-TC VMEM


def _resident_spec(block_shape, index_map):
    """BlockSpec for operands with a constant index_map (resident in VMEM).

    Single-buffered: a constant index_map never re-DMAs, so a second pipeline
    buffer would be pure VMEM waste (decisive on v7x's 64 MiB).
    """
    try:
        return pl.BlockSpec(block_shape, index_map, pipeline_mode=pl.Buffered(1))
    except TypeError:  # API without pipeline_mode: fall back to default buffering
        return pl.BlockSpec(block_shape, index_map)


# --------------------------------------------------------------------------
# Kernels
# --------------------------------------------------------------------------
def _mlp_resident_kernel(x_ref, w1_ref, b1_ref, w2_ref, b2_ref, o_ref, *, chunks):
    """One batch tile, weights fully resident; 4H axis chunked in-kernel."""
    x = x_ref[...].astype(jnp.bfloat16)          # in-kernel cast rides VPU slack
    # Accumulator starts as broadcast(b2): no zeros tile, no separate epilogue.
    acc = jnp.broadcast_to(b2_ref[...], o_ref.shape).astype(jnp.float32)
    for start, size in chunks:                   # static loop; <=4 chunks here
        h = jnp.dot(x, w1_ref[:, start:start + size],
                    preferred_element_type=jnp.float32)          # (TM, size) f32
        h = jnp.maximum(h + b1_ref[:, start:start + size], 0.0)  # bias + ReLU
        acc = acc + jnp.dot(h.astype(jnp.bfloat16),
                            w2_ref[start:start + size, :],
                            preferred_element_type=jnp.float32)  # (TM, Hp) f32
    o_ref[...] = acc.astype(o_ref.dtype)


def _mlp_streamed_kernel(x_ref, w1_ref, b1_ref, w2_ref, b2_ref, o_ref, acc_ref):
    """Large-hidden path: 4H reduction on the grid, W1/W2 blocks streamed."""
    k = pl.program_id(1)

    @pl.when(k == 0)
    def _():
        acc_ref[...] = jnp.broadcast_to(b2_ref[...], acc_ref.shape).astype(jnp.float32)

    x = x_ref[...].astype(jnp.bfloat16)
    h = jnp.dot(x, w1_ref[...], preferred_element_type=jnp.float32)
    h = jnp.maximum(h + b1_ref[...], 0.0)
    acc_ref[...] += jnp.dot(h.astype(jnp.bfloat16), w2_ref[...],
                            preferred_element_type=jnp.float32)

    @pl.when(k == pl.num_programs(1) - 1)
    def _():
        o_ref[...] = acc_ref[...].astype(o_ref.dtype)


# --------------------------------------------------------------------------
# Parameter prep (outside the per-call hot path)
# --------------------------------------------------------------------------
def prepare_params(w1, b1, w2, b2):
    """PyTorch-convention params -> pre-transposed, lane-padded, bf16 weights.

    w1: (4H, H), b1: (4H,), w2: (H, 4H), b2: (H,)
    """
    h4, h = w1.shape
    assert w2.shape == (h, h4)
    hp = _round_up(h, 128)
    h4p = _round_up(h4, 128)

    w1t = jnp.zeros((hp, h4p), jnp.bfloat16)
    w1t = w1t.at[:h, :h4].set(jnp.asarray(w1, jnp.float32).T.astype(jnp.bfloat16))
    w2t = jnp.zeros((h4p, hp), jnp.bfloat16)
    w2t = w2t.at[:h4, :h].set(jnp.asarray(w2, jnp.float32).T.astype(jnp.bfloat16))
    b1r = jnp.zeros((1, h4p), jnp.float32).at[:, :h4].set(jnp.asarray(b1, jnp.float32))
    b2r = jnp.zeros((1, hp), jnp.float32).at[:, :h].set(jnp.asarray(b2, jnp.float32))
    return w1t, b1r, w2t, b2r


# --------------------------------------------------------------------------
# Forward wrapper
# --------------------------------------------------------------------------
def loan_model_block2(x, w1t, b1r, w2t, b2r, *, out_dtype=jnp.float32):
    """x: (B, H) float32.  w1t/b1r/w2t/b2r from prepare_params."""
    B, H = x.shape
    hp, h4p = w1t.shape
    assert w2t.shape == (h4p, hp) and H <= hp

    # Batch tile: multiple of 16 (bf16 packs 2 rows per sublane); for mid-size
    # batches keep >= 2 grid steps so "parallel" can shard v7x's 2 TensorCores.
    if B < 256:
        tm = _round_up(B, 16)
    elif B < 512:
        tm = 128
    elif B < 2048:
        tm = 256
    else:
        tm = 512
    Bp = _round_up(B, tm)

    needs_pad = (Bp != B) or (hp != H)
    if needs_pad:
        # Padding already forces a copy -> do it in bf16 (halves pad traffic).
        xp = jnp.zeros((Bp, hp), jnp.bfloat16).at[:B, :H].set(x.astype(jnp.bfloat16))
        x_bytes = 2
    else:
        # No pad needed: stream f32 directly, cast to bf16 inside the kernel.
        xp = x
        x_bytes = x.dtype.itemsize

    out_bytes = jnp.dtype(out_dtype).itemsize
    cap = _vmem_capacity_bytes() - (8 << 20)         # physical VMEM minus headroom

    cost = pl.CostEstimate(
        flops=4 * Bp * hp * h4p,                     # two matmuls over padded dims
        transcendentals=0,
        bytes_accessed=(Bp * hp * x_bytes + hp * h4p * 2 + h4p * hp * 2
                        + h4p * 4 + hp * 4 + Bp * hp * out_bytes),
    )

    # --- resident-weight path budget (weights single-buffered) ---------------
    max_tk = min(h4p, 2048)                          # h4p = 4*hp -> <= 4 chunks
    resident_bytes = (
        2 * tm * hp * x_bytes            # x tiles (double-buffered)
        + 2 * tm * hp * out_bytes        # out tiles (double-buffered)
        + (hp * h4p + h4p * hp) * 2      # W1 + W2 (bf16, single-buffered)
        + (h4p + hp) * 4                 # biases (f32)
        + tm * max_tk * 4                # hidden chunk (f32)
        + tm * max_tk * 2                # hidden chunk bf16 copy
        + tm * hp * 4                    # f32 accumulator
        + tm * hp * 2                    # in-kernel bf16 copy of x
    )
    resident_budget = int(resident_bytes * 1.25) + (2 << 20)

    if resident_budget <= cap:
        chunks = tuple((s, min(max_tk, h4p - s)) for s in range(0, h4p, max_tk))
        vmem_limit = min(cap, max(resident_budget, 32 << 20))
        out = pl.pallas_call(
            functools.partial(_mlp_resident_kernel, chunks=chunks),
            out_shape=jax.ShapeDtypeStruct((Bp, hp), out_dtype),
            grid=(Bp // tm,),
            in_specs=[
                pl.BlockSpec((tm, hp), lambda i: (i, 0)),      # x: streamed tiles
                _resident_spec((hp, h4p), lambda i: (0, 0)),   # W1: resident
                _resident_spec((1, h4p), lambda i: (0, 0)),    # b1: resident
                _resident_spec((h4p, hp), lambda i: (0, 0)),   # W2: resident
                _resident_spec((1, hp), lambda i: (0, 0)),     # b2: resident
            ],
            out_specs=pl.BlockSpec((tm, hp), lambda i: (i, 0)),
            compiler_params=pltpu.CompilerParams(
                dimension_semantics=("parallel",),
                vmem_limit_bytes=vmem_limit,
            ),
            cost_estimate=cost,
        )(xp, w1t, b1r, w2t, b2r)
    else:
        # Weights too big to keep resident (e.g. v7x, large hidden): put the 4H
        # reduction on the grid (last, "arbitrary"), stream W1 column-blocks /
        # W2 row-blocks, accumulate into VMEM scratch (P3 init/finalize).
        tk = 128
        for cand in (2048, 1024, 512, 256):
            if h4p % cand == 0:
                tk = cand
                break
        streamed_bytes = (
            2 * tm * hp * x_bytes + 2 * tm * hp * out_bytes
            + 2 * (hp * tk + tk * hp) * 2        # W1/W2 blocks (double-buffered)
            + 2 * tk * 4 + hp * 4                # bias blocks
            + tm * hp * 4                        # accumulator scratch
            + tm * tk * 4 + tm * tk * 2          # hidden chunk f32 + bf16 copy
            + tm * hp * 2                        # bf16 copy of x
        )
        streamed_budget = int(streamed_bytes * 1.25) + (2 << 20)
        vmem_limit = min(cap, max(streamed_budget, 32 << 20))
        out = pl.pallas_call(
            _mlp_streamed_kernel,
            out_shape=jax.ShapeDtypeStruct((Bp, hp), out_dtype),
            grid=(Bp // tm, h4p // tk),
            in_specs=[
                pl.BlockSpec((tm, hp), lambda i, k: (i, 0)),   # x (constant in k)
                pl.BlockSpec((hp, tk), lambda i, k: (0, k)),   # W1 column block
                pl.BlockSpec((1, tk), lambda i, k: (0, k)),    # b1 block
                pl.BlockSpec((tk, hp), lambda i, k: (k, 0)),   # W2 row block
                pl.BlockSpec((1, hp), lambda i, k: (0, 0)),    # b2
            ],
            out_specs=pl.BlockSpec((tm, hp), lambda i, k: (i, 0)),
            scratch_shapes=[pltpu.VMEM((tm, hp), jnp.float32)],
            compiler_params=pltpu.CompilerParams(
                dimension_semantics=("parallel", "arbitrary"),
                vmem_limit_bytes=vmem_limit,
            ),
            cost_estimate=cost,
        )(xp, w1t, b1r, w2t, b2r)

    if needs_pad:
        out = out[:B, :H]
    return out


def init_params(key, hidden_size):
    """Deterministic init mirroring nn.Linear default (uniform +-1/sqrt(fan_in))."""
    h, h4 = hidden_size, hidden_size * 4
    k1, k2, k3, k4 = jax.random.split(key, 4)
    bound1 = 1.0 / jnp.sqrt(h)
    bound2 = 1.0 / jnp.sqrt(h4)
    w1 = jax.random.uniform(k1, (h4, h), jnp.float32, -bound1, bound1)
    b1 = jax.random.uniform(k2, (h4,), jnp.float32, -bound1, bound1)
    w2 = jax.random.uniform(k3, (h, h4), jnp.float32, -bound2, bound2)
    b2 = jax.random.uniform(k4, (h,), jnp.float32, -bound2, bound2)
    return w1, b1, w2, b2


if __name__ == "__main__":
    hidden_size = 32      # -> intermediate = 128
    batch = 8

    key = jax.random.PRNGKey(0)
    kx, kp = jax.random.split(key)
    x = jax.random.normal(kx, (batch, hidden_size), jnp.float32)
    w1, b1, w2, b2 = init_params(kp, hidden_size)

    # One-time parameter prep (transpose + pad + bf16 cast) outside the hot path.
    w1t, b1r, w2t, b2r = prepare_params(w1, b1, w2, b2)

    fwd = jax.jit(loan_model_block2)
    out = jax.block_until_ready(fwd(x, w1t, b1r, w2t, b2r))
    assert out.shape == (batch, hidden_size)
    assert out.dtype == jnp.float32

    # Precision-matched pure-JAX reference (bf16 operands, f32 accumulation).
    x_bf = x.astype(jnp.bfloat16)
    h_ref = jnp.maximum(
        jnp.dot(x_bf, w1.T.astype(jnp.bfloat16), preferred_element_type=jnp.float32) + b1,
        0.0)
    ref = jnp.dot(h_ref.astype(jnp.bfloat16), w2.T.astype(jnp.bfloat16),
                  preferred_element_type=jnp.float32) + b2
    assert jnp.allclose(out, ref, atol=2e-3, rtol=2e-3)

    # Sanity vs full-f32 math (looser tolerance for the bf16 weight path).
    ref32 = jnp.maximum(x @ w1.T + b1, 0.0) @ w2.T + b2
    assert jnp.allclose(out, ref32, atol=5e-2, rtol=5e-2)

    print("KERNEL_OK")
</pallas_src>

<mosaic_0001>
module attributes {stable_mosaic.version = 11 : i64} {
  func.func @_mlp_resident_kernel(%arg0: i32, %arg1: memref<16x128xbf16, #tpu.memory_space<vmem>>, %arg2: memref<128x128xbf16, #tpu.memory_space<vmem>>, %arg3: memref<1x128xf32, #tpu.memory_space<vmem>>, %arg4: memref<128x128xbf16, #tpu.memory_space<vmem>>, %arg5: memref<1x128xf32, #tpu.memory_space<vmem>>, %arg6: memref<16x128xf32, #tpu.memory_space<vmem>>) attributes {dimension_semantics = [#tpu.dimension_semantics<parallel>], iteration_bounds = array<i64: 1>, scalar_prefetch = 0 : i64, scratch_operands = 0 : i64, tpu.core_type = #tpu.core_type<tc>, window_params = [{transform_indices = @transform_0, window_bounds = array<i64: 16, 128>}, {pipeline_mode = #tpu.pipeline_mode<synchronous>, transform_indices = @transform_1, window_bounds = array<i64: 128, 128>}, {pipeline_mode = #tpu.pipeline_mode<synchronous>, transform_indices = @transform_2, window_bounds = array<i64: 1, 128>}, {pipeline_mode = #tpu.pipeline_mode<synchronous>, transform_indices = @transform_3, window_bounds = array<i64: 128, 128>}, {pipeline_mode = #tpu.pipeline_mode<synchronous>, transform_indices = @transform_4, window_bounds = array<i64: 1, 128>}, {transform_indices = @transform_5, window_bounds = array<i64: 16, 128>}]} {
    %c0 = arith.constant 0 : index
    %c0_0 = arith.constant 0 : index
    %0 = vector.load %arg1[%c0, %c0_0] : memref<16x128xbf16, #tpu.memory_space<vmem>>, vector<16x128xbf16>
    %c0_1 = arith.constant 0 : index
    %c0_2 = arith.constant 0 : index
    %1 = vector.load %arg5[%c0_1, %c0_2] : memref<1x128xf32, #tpu.memory_space<vmem>>, vector<1x128xf32>
    %2 = vector.shape_cast %1 : vector<1x128xf32> to vector<1x128xf32>
    %3 = vector.broadcast %2 : vector<1x128xf32> to vector<16x128xf32>
    %c0_3 = arith.constant 0 : index
    %c0_4 = arith.constant 0 : index
    %4 = vector.load %arg2[%c0_3, %c0_4] : memref<128x128xbf16, #tpu.memory_space<vmem>>, vector<128x128xbf16>
    %cst = arith.constant dense<0.000000e+00> : vector<16x128xf32>
    %5 = tpu.matmul %0, %4, %cst {dimension_numbers = #tpu.dot_dimension_numbers<[1], [0], [0], [1], [0, 0, 1, 1], [], []>} : vector<16x128xbf16>, vector<128x128xbf16>, vector<16x128xf32> -> vector<16x128xf32>
    %c0_5 = arith.constant 0 : index
    %c0_6 = arith.constant 0 : index
    %6 = vector.load %arg3[%c0_5, %c0_6] : memref<1x128xf32, #tpu.memory_space<vmem>>, vector<1x128xf32>
    %7 = vector.broadcast %6 : vector<1x128xf32> to vector<16x128xf32>
    %8 = arith.addf %5, %7 : vector<16x128xf32>
    %cst_7 = arith.constant 0.000000e+00 : f32
    %9 = vector.broadcast %cst_7 : f32 to vector<16x128xf32>
    %10 = arith.maximumf %8, %9 : vector<16x128xf32>
    %11 = arith.truncf %10 : vector<16x128xf32> to vector<16x128xbf16>
    %c0_8 = arith.constant 0 : index
    %c0_9 = arith.constant 0 : index
    %12 = vector.load %arg4[%c0_8, %c0_9] : memref<128x128xbf16, #tpu.memory_space<vmem>>, vector<128x128xbf16>
    %cst_10 = arith.constant dense<0.000000e+00> : vector<16x128xf32>
    %13 = tpu.matmul %11, %12, %cst_10 {dimension_numbers = #tpu.dot_dimension_numbers<[1], [0], [0], [1], [0, 0, 1, 1], [], []>} : vector<16x128xbf16>, vector<128x128xbf16>, vector<16x128xf32> -> vector<16x128xf32>
    %14 = arith.addf %3, %13 : vector<16x128xf32>
    %c0_11 = arith.constant 0 : index
    %c0_12 = arith.constant 0 : index
    %15 = vector.load %arg6[%c0_11, %c0_12] : memref<16x128xf32, #tpu.memory_space<vmem>>, vector<16x128xf32>
    tpu.vector_store %arg6[%c0_11, %c0_12], %14 {strides = array<i32>} : memref<16x128xf32, #tpu.memory_space<vmem>>, vector<16x128xf32>,
    return
  }
  func.func @transform_0(%arg0: i32) -> (i32, i32) {
    %c0_i32 = arith.constant 0 : i32
    %c0_i32_0 = arith.constant 0 : i32
    return %arg0, %c0_i32 : i32, i32
  }
  func.func @transform_1(%arg0: i32) -> (i32, i32) {
    %c0_i32 = arith.constant 0 : i32
    %c0_i32_0 = arith.constant 0 : i32
    %c0_i32_1 = arith.constant 0 : i32
    return %c0_i32, %c0_i32_0 : i32, i32
  }
  func.func @transform_2(%arg0: i32) -> (i32, i32) {
    %c0_i32 = arith.constant 0 : i32
    %c0_i32_0 = arith.constant 0 : i32
    %c0_i32_1 = arith.constant 0 : i32
    return %c0_i32, %c0_i32_0 : i32, i32
  }
  func.func @transform_3(%arg0: i32) -> (i32, i32) {
    %c0_i32 = arith.constant 0 : i32
    %c0_i32_0 = arith.constant 0 : i32
    %c0_i32_1 = arith.constant 0 : i32
    return %c0_i32, %c0_i32_0 : i32, i32
  }
  func.func @transform_4(%arg0: i32) -> (i32, i32) {
    %c0_i32 = arith.constant 0 : i32
    %c0_i32_0 = arith.constant 0 : i32
    %c0_i32_1 = arith.constant 0 : i32
    return %c0_i32, %c0_i32_0 : i32, i32
  }
  func.func @transform_5(%arg0: i32) -> (i32, i32) {
    %c0_i32 = arith.constant 0 : i32
    %c0_i32_0 = arith.constant 0 : i32
    return %arg0, %c0_i32 : i32, i32
  }
}

</mosaic_0001>

<llo_original>
// kernel: loan_model_block2.1
$region0: #{loan_model_block2.1}
  #allocation0 [shape = 'u32[]', space=smem, size = 0x4, offset = 0x4, fixed_abs, tag = 'smem constant byte address 0x4 - core index']
  #allocation1 [shape = 'u32[144,128]{1,0:T(1,128)}', space=vmem, size = 0x12000, scoped, tag = 'internal scratch']
  %s0 = inlined_call_operand.vmem [shape: bf16[16,128], index: 0, kind: input, shape index: {}]
  %s1 = inlined_call_operand.hbm [shape: bf16[128,128], index: 1, kind: input, shape index: {}]
  %s2 = inlined_call_operand.vmem [shape: f32[1,128], index: 2, kind: input, shape index: {}]
  %s3 = inlined_call_operand.hbm [shape: bf16[128,128], index: 3, kind: input, shape index: {}]
  %s4 = inlined_call_operand.vmem [shape: f32[1,128], index: 4, kind: input, shape index: {}]
  %s5 = inlined_call_operand.vmem [shape: f32[16,128], index: 5, kind: output, shape index: {}]
  %s6 = sld [smem:[#allocation0]]
  $region38: #{loan_model_block2.1} parent=0
    _
  %s8 = ssub.s32 1, %s6
  %s9 = scalar_select 0, %s8, %s6
  $region1: #{loan_model_block2.1} parent=0
    #allocation2 [shape = 'u8[32768]{0}', space=vmem, size = 0x8000, scoped, tag = 'input window, operand 1, single buffered']
    #allocation3 [shape = 's32[1]{0}', space=sflag, size = 0x4, scoped, tag = 'scoped memory for loan_model_block2.1']
    #allocation4 [shape = 'u8[32768]{0}', space=vmem, size = 0x8000, scoped, tag = 'input window, operand 3, single buffered']
    #allocation5 [shape = 's32[1]{0}', space=sflag, size = 0x4, scoped, tag = 'scoped memory for loan_model_block2.1']
    %10 = vsyncpa [#allocation3], 0
    %11 = vsyncpa [#allocation5], 0
    // Predicated region
    $region2: #{loan_model_block2.1} parent=1 // pred_check
      _
    $region3: #{loan_model_block2.1} parent=1 // pred_check_branch
      %13 = sbr.rel (0) target = $region5
    $region4: #{loan_model_block2.1} parent=1 // pred_region
      _
    $region5: #{loan_model_block2.1} parent=1 // pred_fallthru
      _
    // Predicated region
    $region6: #{loan_model_block2.1} parent=1 // pred_check
      _
    $region7: #{loan_model_block2.1} parent=1 // pred_check_branch
      %15 = sbr.rel (0) target = $region9
    $region8: #{loan_model_block2.1} parent=1 // pred_region
      %s17 = ssub.s32 1024, 1024
      %18 = vsyncadd [#allocation3], %s17
      %s19 = sshll.u32 [#allocation2], 4
      %s20 = int_to_ptr.vmem [resolvable:$true] %s19
      %25 = dma.hbm_to_vmem [thread:$0]  %s1, 1024, %s20, [#allocation3], 64, 64, 4
    $region9: #{loan_model_block2.1} parent=1 // pred_fallthru
      _
    // Predicated region
    $region10: #{loan_model_block2.1} parent=1 // pred_check
      _
    $region11: #{loan_model_block2.1} parent=1 // pred_check_branch
      %27 = sbr.rel (0) target = $region13
    $region12: #{loan_model_block2.1} parent=1 // pred_region
      _
    $region13: #{loan_model_block2.1} parent=1 // pred_fallthru
      _
    // Predicated region
    $region14: #{loan_model_block2.1} parent=1 // pred_check
      _
    $region15: #{loan_model_block2.1} parent=1 // pred_check_branch
      %29 = sbr.rel (0) target = $region17
    $region16: #{loan_model_block2.1} parent=1 // pred_region
      %s31 = ssub.s32 1024, 1024
      %32 = vsyncadd [#allocation5], %s31
      %s33 = sshll.u32 [#allocation4], 4
      %s34 = int_to_ptr.vmem [resolvable:$true] %s33
      %39 = dma.hbm_to_vmem [thread:$0]  %s3, 1024, %s34, [#allocation5], 64, 64, 4
    $region17: #{loan_model_block2.1} parent=1 // pred_fallthru
      _
    // Predicated region
    $region18: #{loan_model_block2.1} parent=1 // pred_check
      _
    $region19: #{loan_model_block2.1} parent=1 // pred_check_branch
      %41 = sbr.rel (0) target = $region21
    $region20: #{loan_model_block2.1} parent=1 // pred_region
      _
    $region21: #{loan_model_block2.1} parent=1 // pred_fallthru
      _
    // Predicated region
    $region22: #{loan_model_block2.1} parent=1 // pred_check
      _
    $region23: #{loan_model_block2.1} parent=1 // pred_check_branch
      %43 = sbr.rel (0) target = $region25
    $region24: #{loan_model_block2.1} parent=1 // pred_region
      %44 = dma.done [#allocation3], 1024
    $region25: #{loan_model_block2.1} parent=1 // pred_fallthru
      _
    // Predicated region
    $region26: #{loan_model_block2.1} parent=1 // pred_check
      _
    $region27: #{loan_model_block2.1} parent=1 // pred_check_branch
      %46 = sbr.rel (0) target = $region29
    $region28: #{loan_model_block2.1} parent=1 // pred_region
      %47 = dma.done [#allocation5], 1024
    $region29: #{loan_model_block2.1} parent=1 // pred_fallthru
      _
    %v49 = vld [vmem:[%s0] sm:$0xf]
    %v50 = vld [vmem:[%s0 + $0x4] sm:$0xf]
    %v51 = vld [vmem:[%s4] sm:$0x1]
    %v53 = vlaneseq
    %v54 = vshrl.u32 %v53, 7
    %v55 = vsub.s32 0, %v54
    %v56 = vrot.slane %v51, %v55
    %v58 = vld [vmem:[#allocation2] sm:$0xf]
    %v59 = vld [vmem:[#allocation2 + $0x4] sm:$0xf]
    %v60 = vld [vmem:[#allocation2 + $0x8] sm:$0xf]
    %v61 = vld [vmem:[#allocation2 + $0xc] sm:$0xf]
    %v62 = vld [vmem:[#allocation2 + $0x10] sm:$0xf]
    %v63 = vld [vmem:[#allocation2 + $0x14] sm:$0xf]
    %v64 = vld [vmem:[#allocation2 + $0x18] sm:$0xf]
    %v65 = vld [vmem:[#allocation2 + $0x1c] sm:$0xf]
    %v66 = vld [vmem:[#allocation2 + $0x20] sm:$0xf]
    %v67 = vld [vmem:[#allocation2 + $0x24] sm:$0xf]
    %v68 = vld [vmem:[#allocation2 + $0x28] sm:$0xf]
    %v69 = vld [vmem:[#allocation2 + $0x2c] sm:$0xf]
    %v70 = vld [vmem:[#allocation2 + $0x30] sm:$0xf]
    %v71 = vld [vmem:[#allocation2 + $0x34] sm:$0xf]
    %v72 = vld [vmem:[#allocation2 + $0x38] sm:$0xf]
    %v73 = vld [vmem:[#allocation2 + $0x3c] sm:$0xf]
    %v74 = vld [vmem:[%s2] sm:$0x1]
    %v76 = vlaneseq
    %v77 = vshrl.u32 %v76, 7
    %v78 = vsub.s32 0, %v77
    %v79 = vrot.slane %v74, %v78
    %v83 = vunpack.c.l.b16 %v49
    %v84 = vunpack.c.l.b16 %v50
    %v85 = vpack.c.b16 %v84, %v83
    %v103 = vunpack.c.l.b16 %v58
    %v104 = vunpack.c.l.b16 %v59
    %v105 = vunpack.c.l.b16 %v60
    %v106 = vunpack.c.l.b16 %v61
    %v107 = vunpack.c.l.b16 %v62
    %v108 = vunpack.c.l.b16 %v63
    %v109 = vunpack.c.l.b16 %v64
    %v110 = vunpack.c.l.b16 %v65
    %v111 = vunpack.c.l.b16 %v66
    %v112 = vunpack.c.l.b16 %v67
    %v113 = vunpack.c.l.b16 %v68
    %v114 = vunpack.c.l.b16 %v69
    %v115 = vunpack.c.l.b16 %v70
    %v116 = vunpack.c.l.b16 %v71
    %v117 = vunpack.c.l.b16 %v72
    %v118 = vunpack.c.l.b16 %v73
    %v119 = vpack.c.b16 %v104, %v103
    %v120 = vpack.c.b16 %v106, %v105
    %v121 = vpack.c.b16 %v108, %v107
    %v122 = vpack.c.b16 %v110, %v109
    %v123 = vpack.c.b16 %v112, %v111
    %v124 = vpack.c.b16 %v114, %v113
    %v125 = vpack.c.b16 %v116, %v115
    %v126 = vpack.c.b16 %v118, %v117
    %135 = vmatprep.subr.bf16.mxu0 0
    %136 = vmatpush1.bf16.msra.mxu0 %v119
    %137 = vmatprep.subr.bf16.mxu0 0
    %138 = vmatpush1.bf16.msra.mxu0 %v120
    %139 = vmatprep.subr.bf16.mxu0 0
    %140 = vmatpush1.bf16.msra.mxu0 %v121
    %141 = vmatprep.subr.bf16.mxu0 0
    %142 = vmatpush1.bf16.msra.mxu0 %v122
    %143 = vmatprep.subr.bf16.mxu0 0
    %144 = vmatpush1.bf16.msra.mxu0 %v123
    %145 = vmatprep.subr.bf16.mxu0 0
    %146 = vmatpush1.bf16.msra.mxu0 %v124
    %147 = vmatprep.subr.bf16.mxu0 0
    %148 = vmatpush1.bf16.msra.mxu0 %v125
    %149 = vmatprep.subr.bf16.mxu0 0
    %150 = vmatpush1.bf16.msra.mxu0 %v126
    %151 = vmatprep.subr.bf16.mxu0 0
    %152 = vmatpush1.bf16.msra.mxu0 0
    %153 = vmatprep.subr.bf16.mxu0 0
    %154 = vmatpush1.bf16.msra.mxu0 0
    %155 = vmatprep.subr.bf16.mxu0 0
    %156 = vmatpush1.bf16.msra.mxu0 0
    %157 = vmatprep.subr.bf16.mxu0 0
    %158 = vmatpush1.bf16.msra.mxu0 0
    %159 = vmatprep.subr.bf16.mxu0 0
    %160 = vmatpush1.bf16.msra.mxu0 0
    %161 = vmatprep.subr.bf16.mxu0 0
    %162 = vmatpush1.bf16.msra.mxu0 0
    %163 = vmatprep.subr.bf16.mxu0 0
    %164 = vmatpush1.bf16.msra.mxu0 0
    %165 = vmatprep.subr.bf16.mxu0 0
    %166 = vmatpush1.bf16.msra.mxu0 0
    %167 = vmatprep.mubr.bf16.mxu0 0
    %168 = vmatmul.mubr.bf16.gmra.mrb[0].mxu0 %v85
    %v169 = vpop.f32.mrb[0].mxu0
    %v170 = vadd.f32 %v79, %v169
    %v171 = vpop.f32.mrb[0].mxu0
    %v172 = vpop.f32.mrb[0].mxu0
    %v173 = vadd.f32 %v79, %v172
    %v174 = vpop.f32.mrb[0].mxu0
    %175 = vdwg.mxu0
    %v176 = vmax.f32 %v170, 0.0
    %v177 = vmax.f32 %v173, 0.0
    %v178 = vpack.c.bf16 %v177, %v176
    %v179 = vld [vmem:[#allocation4] sm:$0xf]
    %v180 = vld [vmem:[#allocation4 + $0x4] sm:$0xf]
    %v181 = vld [vmem:[#allocation4 + $0x8] sm:$0xf]
    %v182 = vld [vmem:[#allocation4 + $0xc] sm:$0xf]
    %v183 = vld [vmem:[#allocation4 + $0x10] sm:$0xf]
    %v184 = vld [vmem:[#allocation4 + $0x14] sm:$0xf]
    %v185 = vld [vmem:[#allocation4 + $0x18] sm:$0xf]
    %v186 = vld [vmem:[#allocation4 + $0x1c] sm:$0xf]
    %v187 = vld [vmem:[#allocation4 + $0x20] sm:$0xf]
    %v188 = vld [vmem:[#allocation4 + $0x24] sm:$0xf]
    %v189 = vld [vmem:[#allocation4 + $0x28] sm:$0xf]
    %v190 = vld [vmem:[#allocation4 + $0x2c] sm:$0xf]
    %v191 = vld [vmem:[#allocation4 + $0x30] sm:$0xf]
    %v192 = vld [vmem:[#allocation4 + $0x34] sm:$0xf]
    %v193 = vld [vmem:[#allocation4 + $0x38] sm:$0xf]
    %v194 = vld [vmem:[#allocation4 + $0x3c] sm:$0xf]
    %v211 = vunpack.c.l.b16 %v179
    %v212 = vunpack.c.l.b16 %v180
    %v213 = vunpack.c.l.b16 %v181
    %v214 = vunpack.c.l.b16 %v182
    %v215 = vunpack.c.l.b16 %v183
    %v216 = vunpack.c.l.b16 %v184
    %v217 = vunpack.c.l.b16 %v185
    %v218 = vunpack.c.l.b16 %v186
    %v219 = vunpack.c.l.b16 %v187
    %v220 = vunpack.c.l.b16 %v188
    %v221 = vunpack.c.l.b16 %v189
    %v222 = vunpack.c.l.b16 %v190
    %v223 = vunpack.c.l.b16 %v191
    %v224 = vunpack.c.l.b16 %v192
    %v225 = vunpack.c.l.b16 %v193
    %v226 = vunpack.c.l.b16 %v194
    %v227 = vpack.c.b16 %v212, %v211
    %v228 = vpack.c.b16 %v214, %v213
    %v229 = vpack.c.b16 %v216, %v215
    %v230 = vpack.c.b16 %v218, %v217
    %v231 = vpack.c.b16 %v220, %v219
    %v232 = vpack.c.b16 %v222, %v221
    %v233 = vpack.c.b16 %v224, %v223
    %v234 = vpack.c.b16 %v226, %v225
    %243 = vmatprep.subr.bf16.mxu0 0
    %244 = vmatpush1.bf16.msra.mxu0 %v227
    %245 = vmatprep.subr.bf16.mxu0 0
    %246 = vmatpush1.bf16.msra.mxu0 %v228
    %247 = vmatprep.subr.bf16.mxu0 0
    %248 = vmatpush1.bf16.msra.mxu0 %v229
    %249 = vmatprep.subr.bf16.mxu0 0
    %250 = vmatpush1.bf16.msra.mxu0 %v230
    %251 = vmatprep.subr.bf16.mxu0 0
    %252 = vmatpush1.bf16.msra.mxu0 %v231
    %253 = vmatprep.subr.bf16.mxu0 0
    %254 = vmatpush1.bf16.msra.mxu0 %v232
    %255 = vmatprep.subr.bf16.mxu0 0
    %256 = vmatpush1.bf16.msra.mxu0 %v233
    %257 = vmatprep.subr.bf16.mxu0 0
    %258 = vmatpush1.bf16.msra.mxu0 %v234
    %259 = vmatprep.subr.bf16.mxu0 0
    %260 = vmatpush1.bf16.msra.mxu0 0
    %261 = vmatprep.subr.bf16.mxu0 0
    %262 = vmatpush1.bf16.msra.mxu0 0
    %263 = vmatprep.subr.bf16.mxu0 0
    %264 = vmatpush1.bf16.msra.mxu0 0
    %265 = vmatprep.subr.bf16.mxu0 0
    %266 = vmatpush1.bf16.msra.mxu0 0
    %267 = vmatprep.subr.bf16.mxu0 0
    %268 = vmatpush1.bf16.msra.mxu0 0
    %269 = vmatprep.subr.bf16.mxu0 0
    %270 = vmatpush1.bf16.msra.mxu0 0
    %271 = vmatprep.subr.bf16.mxu0 0
    %272 = vmatpush1.bf16.msra.mxu0 0
    %273 = vmatprep.subr.bf16.mxu0 0
    %274 = vmatpush1.bf16.msra.mxu0 0
    %275 = vmatprep.mubr.bf16.mxu0 0
    %276 = vmatmul.mubr.bf16.gmra.mrb[0].mxu0 %v178
    %v277 = vpop.f32.mrb[0].mxu0
    %v278 = vadd.f32 0.0, %v277
    %v279 = vpop.f32.mrb[0].mxu0
    %v280 = vpop.f32.mrb[0].mxu0
    %v281 = vadd.f32 0.0, %v280
    %v282 = vpop.f32.mrb[0].mxu0
    %283 = vdwg.mxu0
    %v284 = vadd.f32 %v56, %v278
    %v285 = vadd.f32 %v56, %v281
    %286 = vst [vmem:[%s5] sm:$0xff] %v284
    %287 = vst [vmem:[%s5 + $0x8] sm:$0xff] %v285
    // Predicated region
    $region30: #{loan_model_block2.1} parent=1 // pred_check
      _
    $region31: #{loan_model_block2.1} parent=1 // pred_check_branch
      %289 = sbr.rel (0) target = $region33
    $region32: #{loan_model_block2.1} parent=1 // pred_region
      _
    $region33: #{loan_model_block2.1} parent=1 // pred_fallthru
      _
    // Predicated region
    $region34: #{loan_model_block2.1} parent=1 // pred_check
      _
    $region35: #{loan_model_block2.1} parent=1 // pred_check_branch
      %291 = sbr.rel (0) target = $region37
    $region36: #{loan_model_block2.1} parent=1 // pred_region
      _
    $region37: #{loan_model_block2.1} parent=1 // pred_fallthru
      _
    %292 = vsyncpa [#allocation3], 1
    %293 = vsyncpa [#allocation5], 1

</llo_original>
